<compile_context>
chip_gen: v5e
topology: v5e:2x2
jax: 0.10.0
libtpu: 0.0.40
codegen_flags: <defaults>
</compile_context>

<pallas_src>
import jax
import jax.numpy as jnp
import numpy as np
from jax.experimental import pallas as pl
from jax.experimental.pallas import tpu as pltpu

H1, H2 = 128, 64  # hidden widths of RewardNetwork


def _round_up(n, m):
    return ((n + m - 1) // m) * m


def reward_kernel(x_ref, w1_ref, b1_ref, w2_ref, b2_ref, w3_ref, b3_ref, o_ref):
    # x_ref: (in_size, TB) bf16 — batch on lanes.
    # fc1 + relu (bf16 MXU matmul, f32 accumulate; bias/relu in f32)
    h1 = jnp.dot(w1_ref[...], x_ref[...], preferred_element_type=jnp.float32)
    h1 = jnp.maximum(h1 + b1_ref[...], 0.0)                       # (H1, TB) f32
    # fc2 + relu
    h2 = jnp.dot(w2_ref[...], h1.astype(jnp.bfloat16),
                 preferred_element_type=jnp.float32)
    h2 = jnp.maximum(h2 + b2_ref[...], 0.0)                       # (H2, TB) f32
    # fc3 (output width 1): VPU multiply + sublane reduce (XLU) instead of an
    # N=1 MXU matmul; result is already a lane-dense (1, TB) row.
    h3 = jnp.sum(h2 * w3_ref[...], axis=0, keepdims=True) + b3_ref[0]
    o_ref[...] = jnp.tanh(h3).astype(o_ref.dtype)


def reward_network_forward(x, params, *, block_b=512):
    """x: (B, input_size) float32 -> (B, 1) float32 reward."""
    B, in_size = x.shape
    w1, b1 = params["w1"], params["b1"]      # (H1, in) bf16, (H1, 1) f32
    w2, b2 = params["w2"], params["b2"]      # (H2, H1) bf16, (H2, 1) f32
    w3, b3 = params["w3"], params["b3"]      # (H2, 1)  f32,  (1,)    f32

    # Batch tile: one tile for small B, otherwise a multiple of 128 so the
    # lane-dense blocks stay unmasked.  (block_b=512 keeps the double-buffered
    # working set far under every generation's scoped-VMEM default.)
    b_rounded = _round_up(B, 8)
    tb = b_rounded if b_rounded <= block_b else block_b
    b_pad = _round_up(B, tb)
    num_tiles = b_pad // tb

    # Lane-dense layout: batch on the lane axis, bf16 for the streamed input.
    x_bf = x.astype(jnp.bfloat16)
    if b_pad != B:
        x_bf = jnp.pad(x_bf, ((0, b_pad - B), (0, 0)))
    x_t = x_bf.T                                              # (in_size, b_pad)

    flops = 2 * b_pad * (in_size * H1 + H1 * H2 + H2)
    weight_bytes = sum(int(np.prod(p.shape)) * p.dtype.itemsize
                       for p in (w1, b1, w2, b2, w3, b3))
    bytes_accessed = int(x_t.size) * x_t.dtype.itemsize + weight_bytes + 4 * b_pad

    out_row = pl.pallas_call(
        reward_kernel,
        out_shape=jax.ShapeDtypeStruct((1, b_pad), jnp.float32),
        grid=(num_tiles,),
        in_specs=[
            # streamed per-tile input (auto double-buffered by Pallas)
            pl.BlockSpec((in_size, tb), lambda i: (0, i)),
            # weights / biases: constant index maps -> DMA'd once, VMEM-resident
            pl.BlockSpec((H1, in_size), lambda i: (0, 0)),
            pl.BlockSpec((H1, 1), lambda i: (0, 0)),
            pl.BlockSpec((H2, H1), lambda i: (0, 0)),
            pl.BlockSpec((H2, 1), lambda i: (0, 0)),
            pl.BlockSpec((H2, 1), lambda i: (0, 0)),
            # fc3 scalar bias lives in SMEM
            pl.BlockSpec(memory_space=pltpu.SMEM),
        ],
        out_specs=pl.BlockSpec((1, tb), lambda i: (0, i)),
        compiler_params=pltpu.CompilerParams(
            dimension_semantics=("parallel",)),
        cost_estimate=pl.CostEstimate(
            flops=flops, transcendentals=b_pad, bytes_accessed=bytes_accessed),
    )(x_t, w1, b1, w2, b2, w3, b3)

    return out_row[0, :B].reshape(B, 1)


def init_params(key, input_size):
    """PyTorch nn.Linear default init: U(-1/sqrt(fan_in), 1/sqrt(fan_in)),
    stored in the kernel layout (weights in PyTorch (out, in) order)."""
    def linear(key, fan_in, fan_out):
        kw, kb = jax.random.split(key)
        bound = 1.0 / np.sqrt(fan_in)
        w = jax.random.uniform(kw, (fan_out, fan_in), jnp.float32, -bound, bound)
        b = jax.random.uniform(kb, (fan_out,), jnp.float32, -bound, bound)
        return w, b

    k1, k2, k3 = jax.random.split(key, 3)
    w1, b1 = linear(k1, input_size, H1)
    w2, b2 = linear(k2, H1, H2)
    w3, b3 = linear(k3, H2, 1)
    return dict(
        # MXU weights in bf16 (f32 accumulation in-kernel).
        w1=w1.astype(jnp.bfloat16), b1=b1.reshape(H1, 1),
        w2=w2.astype(jnp.bfloat16), b2=b2.reshape(H2, 1),
        # fc3 weight kept f32 as an (H2, 1) column for the VPU/XLU reduction.
        w3=w3.reshape(H2, 1), b3=b3.reshape(1,),
    )


def _reference(x, params):
    w1f = params["w1"].astype(jnp.float32)
    w2f = params["w2"].astype(jnp.float32)
    h1 = jnp.maximum(x @ w1f.T + params["b1"][:, 0], 0.0)
    h2 = jnp.maximum(h1 @ w2f.T + params["b2"][:, 0], 0.0)
    return jnp.tanh(h2 @ params["w3"] + params["b3"])


if __name__ == "__main__":
    key = jax.random.PRNGKey(0)
    k_params, k_x1, k_x2 = jax.random.split(key, 3)

    input_size = 32
    params = init_params(k_params, input_size)

    # Small batch: single tile path.
    x_small = jax.random.normal(k_x1, (8, input_size), jnp.float32)
    out_small = jax.block_until_ready(reward_network_forward(x_small, params))
    ref_small = _reference(x_small, params)
    # bf16 MXU inputs with f32 accumulation -> relaxed tolerance.
    np.testing.assert_allclose(np.asarray(out_small), np.asarray(ref_small),
                               rtol=2e-2, atol=2e-2)
    assert out_small.shape == (8, 1)

    # Larger batch: exercises the multi-tile grid + padding path.
    x_big = jax.random.normal(k_x2, (700, input_size), jnp.float32)
    out_big = jax.block_until_ready(reward_network_forward(x_big, params))
    ref_big = _reference(x_big, params)
    np.testing.assert_allclose(np.asarray(out_big), np.asarray(ref_big),
                               rtol=2e-2, atol=2e-2)
    assert out_big.shape == (700, 1)

    print("KERNEL_OK")
</pallas_src>

<mosaic_0001>
module attributes {stable_mosaic.version = 11 : i64} {
  func.func @reward_kernel(%arg0: i32, %arg1: memref<32x8xbf16, #tpu.memory_space<vmem>>, %arg2: memref<128x32xbf16, #tpu.memory_space<vmem>>, %arg3: memref<128x1xf32, #tpu.memory_space<vmem>>, %arg4: memref<64x128xbf16, #tpu.memory_space<vmem>>, %arg5: memref<64x1xf32, #tpu.memory_space<vmem>>, %arg6: memref<64x1xf32, #tpu.memory_space<vmem>>, %arg7: memref<1xf32, #tpu.memory_space<smem>>, %arg8: memref<1x8xf32, #tpu.memory_space<vmem>>) attributes {dimension_semantics = [#tpu.dimension_semantics<parallel>], iteration_bounds = array<i64: 1>, scalar_prefetch = 0 : i64, scratch_operands = 0 : i64, tpu.core_type = #tpu.core_type<tc>, window_params = [{transform_indices = @transform_0, window_bounds = array<i64: 32, 8>}, {pipeline_mode = #tpu.pipeline_mode<synchronous>, transform_indices = @transform_1, window_bounds = array<i64: 128, 32>}, {pipeline_mode = #tpu.pipeline_mode<synchronous>, transform_indices = @transform_2, window_bounds = array<i64: 128, 1>}, {pipeline_mode = #tpu.pipeline_mode<synchronous>, transform_indices = @transform_3, window_bounds = array<i64: 64, 128>}, {pipeline_mode = #tpu.pipeline_mode<synchronous>, transform_indices = @transform_4, window_bounds = array<i64: 64, 1>}, {pipeline_mode = #tpu.pipeline_mode<synchronous>, transform_indices = @transform_5, window_bounds = array<i64: 64, 1>}, {transform_indices = @transform_6, window_bounds = array<i64: 1>}, {transform_indices = @transform_7, window_bounds = array<i64: 1, 8>}]} {
    %c0 = arith.constant 0 : index
    %c0_0 = arith.constant 0 : index
    %0 = vector.load %arg2[%c0, %c0_0] : memref<128x32xbf16, #tpu.memory_space<vmem>>, vector<128x32xbf16>
    %c0_1 = arith.constant 0 : index
    %c0_2 = arith.constant 0 : index
    %1 = vector.load %arg1[%c0_1, %c0_2] : memref<32x8xbf16, #tpu.memory_space<vmem>>, vector<32x8xbf16>
    %cst = arith.constant dense<0.000000e+00> : vector<128x8xf32>
    %2 = tpu.matmul %0, %1, %cst {dimension_numbers = #tpu.dot_dimension_numbers<[1], [0], [0], [1], [0, 0, 1, 1], [], []>} : vector<128x32xbf16>, vector<32x8xbf16>, vector<128x8xf32> -> vector<128x8xf32>
    %c0_3 = arith.constant 0 : index
    %c0_4 = arith.constant 0 : index
    %3 = vector.load %arg3[%c0_3, %c0_4] : memref<128x1xf32, #tpu.memory_space<vmem>>, vector<128x1xf32>
    %4 = vector.broadcast %3 : vector<128x1xf32> to vector<128x8xf32>
    %5 = arith.addf %2, %4 : vector<128x8xf32>
    %cst_5 = arith.constant 0.000000e+00 : f32
    %6 = vector.broadcast %cst_5 : f32 to vector<128x8xf32>
    %7 = arith.maximumf %5, %6 : vector<128x8xf32>
    %c0_6 = arith.constant 0 : index
    %c0_7 = arith.constant 0 : index
    %8 = vector.load %arg4[%c0_6, %c0_7] : memref<64x128xbf16, #tpu.memory_space<vmem>>, vector<64x128xbf16>
    %9 = arith.truncf %7 : vector<128x8xf32> to vector<128x8xbf16>
    %cst_8 = arith.constant dense<0.000000e+00> : vector<64x8xf32>
    %10 = tpu.matmul %8, %9, %cst_8 {dimension_numbers = #tpu.dot_dimension_numbers<[1], [0], [0], [1], [0, 0, 1, 1], [], []>} : vector<64x128xbf16>, vector<128x8xbf16>, vector<64x8xf32> -> vector<64x8xf32>
    %c0_9 = arith.constant 0 : index
    %c0_10 = arith.constant 0 : index
    %11 = vector.load %arg5[%c0_9, %c0_10] : memref<64x1xf32, #tpu.memory_space<vmem>>, vector<64x1xf32>
    %12 = vector.broadcast %11 : vector<64x1xf32> to vector<64x8xf32>
    %13 = arith.addf %10, %12 : vector<64x8xf32>
    %cst_11 = arith.constant 0.000000e+00 : f32
    %14 = vector.broadcast %cst_11 : f32 to vector<64x8xf32>
    %15 = arith.maximumf %13, %14 : vector<64x8xf32>
    %c0_12 = arith.constant 0 : index
    %c0_13 = arith.constant 0 : index
    %16 = vector.load %arg6[%c0_12, %c0_13] : memref<64x1xf32, #tpu.memory_space<vmem>>, vector<64x1xf32>
    %17 = vector.broadcast %16 : vector<64x1xf32> to vector<64x8xf32>
    %18 = arith.mulf %15, %17 : vector<64x8xf32>
    %cst_14 = arith.constant dense<0.000000e+00> : vector<8xf32>
    %19 = vector.multi_reduction <add>, %18, %cst_14 [0] : vector<64x8xf32> to vector<8xf32>
    %20 = vector.shape_cast %19 : vector<8xf32> to vector<1x8xf32>
    %c0_15 = arith.constant 0 : index
    %21 = memref.load %arg7[%c0_15] : memref<1xf32, #tpu.memory_space<smem>>
    %22 = vector.broadcast %21 : f32 to vector<1x8xf32>
    %23 = arith.addf %20, %22 : vector<1x8xf32>
    %24 = math.tanh %23 : vector<1x8xf32>
    %c0_16 = arith.constant 0 : index
    %c0_17 = arith.constant 0 : index
    %25 = vector.load %arg8[%c0_16, %c0_17] : memref<1x8xf32, #tpu.memory_space<vmem>>, vector<1x8xf32>
    tpu.vector_store %arg8[%c0_16, %c0_17], %24 {strides = array<i32>} : memref<1x8xf32, #tpu.memory_space<vmem>>, vector<1x8xf32>,
    return
  }
  func.func @transform_0(%arg0: i32) -> (i32, i32) {
    %c0_i32 = arith.constant 0 : i32
    %c0_i32_0 = arith.constant 0 : i32
    return %c0_i32, %arg0 : i32, i32
  }
  func.func @transform_1(%arg0: i32) -> (i32, i32) {
    %c0_i32 = arith.constant 0 : i32
    %c0_i32_0 = arith.constant 0 : i32
    %c0_i32_1 = arith.constant 0 : i32
    return %c0_i32, %c0_i32_0 : i32, i32
  }
  func.func @transform_2(%arg0: i32) -> (i32, i32) {
    %c0_i32 = arith.constant 0 : i32
    %c0_i32_0 = arith.constant 0 : i32
    %c0_i32_1 = arith.constant 0 : i32
    return %c0_i32, %c0_i32_0 : i32, i32
  }
  func.func @transform_3(%arg0: i32) -> (i32, i32) {
    %c0_i32 = arith.constant 0 : i32
    %c0_i32_0 = arith.constant 0 : i32
    %c0_i32_1 = arith.constant 0 : i32
    return %c0_i32, %c0_i32_0 : i32, i32
  }
  func.func @transform_4(%arg0: i32) -> (i32, i32) {
    %c0_i32 = arith.constant 0 : i32
    %c0_i32_0 = arith.constant 0 : i32
    %c0_i32_1 = arith.constant 0 : i32
    return %c0_i32, %c0_i32_0 : i32, i32
  }
  func.func @transform_5(%arg0: i32) -> (i32, i32) {
    %c0_i32 = arith.constant 0 : i32
    %c0_i32_0 = arith.constant 0 : i32
    %c0_i32_1 = arith.constant 0 : i32
    return %c0_i32, %c0_i32_0 : i32, i32
  }
  func.func @transform_6(%arg0: i32) -> i32 {
    %c0_i32 = arith.constant 0 : i32
    %c0_i32_0 = arith.constant 0 : i32
    return %c0_i32 : i32
  }
  func.func @transform_7(%arg0: i32) -> (i32, i32) {
    %c0_i32 = arith.constant 0 : i32
    %c0_i32_0 = arith.constant 0 : i32
    return %c0_i32, %arg0 : i32, i32
  }
}

</mosaic_0001>

<llo_original>
// kernel: tpu_custom_call.1
$region0: #{tpu_custom_call.1}
  #allocation0 [shape = 'u32[]', space=smem, size = 0x4, offset = 0x4, fixed_abs, tag = 'smem constant byte address 0x4 - core index']
  #allocation1 [shape = 'u32[72,128]{1,0:T(1,128)}', space=vmem, size = 0x9000, scoped, tag = 'internal scratch']
  #allocation2 [shape = 'f32[1]{0:T(128)S(6)}', space=smem, size = 0x200, scoped, tag = 'scoped memory for tpu_custom_call.1']
  %s0 = inlined_call_operand.vmem [shape: bf16[32,8], index: 0, kind: input, shape index: {}]
  %s1 = inlined_call_operand.vmem [shape: bf16[128,32], index: 1, kind: input, shape index: {}]
  %s2 = inlined_call_operand.vmem [shape: f32[128,1], index: 2, kind: input, shape index: {}]
  %s3 = inlined_call_operand.vmem [shape: bf16[64,128], index: 3, kind: input, shape index: {}]
  %s4 = inlined_call_operand.vmem [shape: f32[64,1], index: 4, kind: input, shape index: {}]
  %s5 = inlined_call_operand.vmem [shape: f32[64,1], index: 5, kind: input, shape index: {}]
  %s6 = inlined_call_operand.<no memory space> [shape: f32[1], index: 6, kind: input, shape index: {}]
  %s7 = inlined_call_operand.hbm [shape: f32[1,8], index: 7, kind: output, shape index: {}]
  %s8 = sld [smem:[#allocation0]]
  $region38: #{tpu_custom_call.1} parent=0
    _
  %s10 = ssub.s32 1, %s8
  %s11 = scalar_select 0, %s10, %s8
  %12 = sst [smem:[#allocation2]] %s6
  $region1: #{tpu_custom_call.1} parent=0
    #allocation3 [shape = 'u8[512]{0}', space=vmem, size = 0x400, scoped, tag = 'output window, operand 0, single buffered']
    #allocation4 [shape = 's32[1]{0}', space=sflag, size = 0x4, scoped, tag = 'scoped memory for tpu_custom_call.1']
    %13 = vsyncpa [#allocation4], 0
    // Predicated region
    $region2: #{tpu_custom_call.1} parent=1 // pred_check
      _
    $region3: #{tpu_custom_call.1} parent=1 // pred_check_branch
      %15 = sbr.rel (0) target = $region5
    $region4: #{tpu_custom_call.1} parent=1 // pred_region
      _
    $region5: #{tpu_custom_call.1} parent=1 // pred_fallthru
      _
    // Predicated region
    $region6: #{tpu_custom_call.1} parent=1 // pred_check
      _
    $region7: #{tpu_custom_call.1} parent=1 // pred_check_branch
      %17 = sbr.rel (0) target = $region9
    $region8: #{tpu_custom_call.1} parent=1 // pred_region
      _
    $region9: #{tpu_custom_call.1} parent=1 // pred_fallthru
      _
    // Predicated region
    $region10: #{tpu_custom_call.1} parent=1 // pred_check
      _
    $region11: #{tpu_custom_call.1} parent=1 // pred_check_branch
      %19 = sbr.rel (0) target = $region13
    $region12: #{tpu_custom_call.1} parent=1 // pred_region
      _
    $region13: #{tpu_custom_call.1} parent=1 // pred_fallthru
      _
    // Predicated region
    $region14: #{tpu_custom_call.1} parent=1 // pred_check
      _
    $region15: #{tpu_custom_call.1} parent=1 // pred_check_branch
      %21 = sbr.rel (0) target = $region17
    $region16: #{tpu_custom_call.1} parent=1 // pred_region
      _
    $region17: #{tpu_custom_call.1} parent=1 // pred_fallthru
      _
    // Predicated region
    $region18: #{tpu_custom_call.1} parent=1 // pred_check
      _
    $region19: #{tpu_custom_call.1} parent=1 // pred_check_branch
      %23 = sbr.rel (0) target = $region21
    $region20: #{tpu_custom_call.1} parent=1 // pred_region
      _
    $region21: #{tpu_custom_call.1} parent=1 // pred_fallthru
      _
    // Predicated region
    $region22: #{tpu_custom_call.1} parent=1 // pred_check
      _
    $region23: #{tpu_custom_call.1} parent=1 // pred_check_branch
      %25 = sbr.rel (0) target = $region25
    $region24: #{tpu_custom_call.1} parent=1 // pred_region
      _
    $region25: #{tpu_custom_call.1} parent=1 // pred_fallthru
      _
    // Predicated region
    $region26: #{tpu_custom_call.1} parent=1 // pred_check
      _
    $region27: #{tpu_custom_call.1} parent=1 // pred_check_branch
      %27 = sbr.rel (0) target = $region29
    $region28: #{tpu_custom_call.1} parent=1 // pred_region
      _
    $region29: #{tpu_custom_call.1} parent=1 // pred_fallthru
      _
    %v29 = vld [vmem:[%s1] sm:$0xf]
    %v30 = vld [vmem:[%s1 + $0x4] sm:$0xf]
    %v31 = vld [vmem:[%s1 + $0x8] sm:$0xf]
    %v32 = vld [vmem:[%s1 + $0xc] sm:$0xf]
    %v33 = vld [vmem:[%s1 + $0x10] sm:$0xf]
    %v34 = vld [vmem:[%s1 + $0x14] sm:$0xf]
    %v35 = vld [vmem:[%s1 + $0x18] sm:$0xf]
    %v36 = vld [vmem:[%s1 + $0x1c] sm:$0xf]
    %v37 = vld [vmem:[%s1 + $0x20] sm:$0xf]
    %v38 = vld [vmem:[%s1 + $0x24] sm:$0xf]
    %v39 = vld [vmem:[%s1 + $0x28] sm:$0xf]
    %v40 = vld [vmem:[%s1 + $0x2c] sm:$0xf]
    %v41 = vld [vmem:[%s1 + $0x30] sm:$0xf]
    %v42 = vld [vmem:[%s1 + $0x34] sm:$0xf]
    %v43 = vld [vmem:[%s1 + $0x38] sm:$0xf]
    %v44 = vld [vmem:[%s1 + $0x3c] sm:$0xf]
    %v45 = vld [vmem:[%s0] sm:$0xf]
    %v46 = vld [vmem:[%s0 + $0x4] sm:$0xf]
    %v47 = vld [vmem:[%s0 + $0x8] sm:$0xf]
    %v48 = vld [vmem:[%s0 + $0xc] sm:$0xf]
    %v49 = vld [vmem:[%s2] sm:$0xff]
    %v50 = vld [vmem:[%s2 + $0x8] sm:$0xff]
    %v51 = vld [vmem:[%s2 + $0x10] sm:$0xff]
    %v52 = vld [vmem:[%s2 + $0x18] sm:$0xff]
    %v53 = vld [vmem:[%s2 + $0x20] sm:$0xff]
    %v54 = vld [vmem:[%s2 + $0x28] sm:$0xff]
    %v55 = vld [vmem:[%s2 + $0x30] sm:$0xff]
    %v56 = vld [vmem:[%s2 + $0x38] sm:$0xff]
    %v57 = vld [vmem:[%s2 + $0x40] sm:$0xff]
    %v58 = vld [vmem:[%s2 + $0x48] sm:$0xff]
    %v59 = vld [vmem:[%s2 + $0x50] sm:$0xff]
    %v60 = vld [vmem:[%s2 + $0x58] sm:$0xff]
    %v61 = vld [vmem:[%s2 + $0x60] sm:$0xff]
    %v62 = vld [vmem:[%s2 + $0x68] sm:$0xff]
    %v63 = vld [vmem:[%s2 + $0x70] sm:$0xff]
    %v64 = vld [vmem:[%s2 + $0x78] sm:$0xff]
    %66 = vset.pattern.permute.xlu0 0
    %67 = vperm.xlu0 %66, %v49
    %v68 = vpop.permute.xlu0 %67
    %71 = vset.pattern.permute.xlu0 0
    %72 = vperm.xlu0 %71, %v50
    %v73 = vpop.permute.xlu0 %72
    %76 = vset.pattern.permute.xlu0 0
    %77 = vperm.xlu0 %76, %v51
    %v78 = vpop.permute.xlu0 %77
    %81 = vset.pattern.permute.xlu0 0
    %82 = vperm.xlu0 %81, %v52
    %v83 = vpop.permute.xlu0 %82
    %86 = vset.pattern.permute.xlu0 0
    %87 = vperm.xlu0 %86, %v53
    %v88 = vpop.permute.xlu0 %87
    %91 = vset.pattern.permute.xlu0 0
    %92 = vperm.xlu0 %91, %v54
    %v93 = vpop.permute.xlu0 %92
    %96 = vset.pattern.permute.xlu0 0
    %97 = vperm.xlu0 %96, %v55
    %v98 = vpop.permute.xlu0 %97
    %101 = vset.pattern.permute.xlu0 0
    %102 = vperm.xlu0 %101, %v56
    %v103 = vpop.permute.xlu0 %102
    %106 = vset.pattern.permute.xlu0 0
    %107 = vperm.xlu0 %106, %v57
    %v108 = vpop.permute.xlu0 %107
    %111 = vset.pattern.permute.xlu0 0
    %112 = vperm.xlu0 %111, %v58
    %v113 = vpop.permute.xlu0 %112
    %116 = vset.pattern.permute.xlu0 0
    %117 = vperm.xlu0 %116, %v59
    %v118 = vpop.permute.xlu0 %117
    %121 = vset.pattern.permute.xlu0 0
    %122 = vperm.xlu0 %121, %v60
    %v123 = vpop.permute.xlu0 %122
    %126 = vset.pattern.permute.xlu0 0
    %127 = vperm.xlu0 %126, %v61
    %v128 = vpop.permute.xlu0 %127
    %131 = vset.pattern.permute.xlu0 0
    %132 = vperm.xlu0 %131, %v62
    %v133 = vpop.permute.xlu0 %132
    %136 = vset.pattern.permute.xlu0 0
    %137 = vperm.xlu0 %136, %v63
    %v138 = vpop.permute.xlu0 %137
    %141 = vset.pattern.permute.xlu0 0
    %142 = vperm.xlu0 %141, %v64
    %v143 = vpop.permute.xlu0 %142
    %v161 = vunpack.c.l.b16 %v29
    %v162 = vunpack.c.l.b16 %v30
    %v163 = vunpack.c.l.b16 %v31
    %v164 = vunpack.c.l.b16 %v32
    %v165 = vunpack.c.l.b16 %v33
    %v166 = vunpack.c.l.b16 %v34
    %v167 = vunpack.c.l.b16 %v35
    %v168 = vunpack.c.l.b16 %v36
    %v169 = vunpack.c.l.b16 %v37
    %v170 = vunpack.c.l.b16 %v38
    %v171 = vunpack.c.l.b16 %v39
    %v172 = vunpack.c.l.b16 %v40
    %v173 = vunpack.c.l.b16 %v41
    %v174 = vunpack.c.l.b16 %v42
    %v175 = vunpack.c.l.b16 %v43
    %v176 = vunpack.c.l.b16 %v44
    %v177 = vpack.c.b16 %v162, %v161
    %v178 = vpack.c.b16 %v164, %v163
    %v179 = vpack.c.b16 %v166, %v165
    %v180 = vpack.c.b16 %v168, %v167
    %v181 = vpack.c.b16 %v170, %v169
    %v182 = vpack.c.b16 %v172, %v171
    %v183 = vpack.c.b16 %v174, %v173
    %v184 = vpack.c.b16 %v176, %v175
    %v189 = vunpack.c.l.b16 %v45
    %v190 = vunpack.c.l.b16 %v46
    %v191 = vunpack.c.l.b16 %v47
    %v192 = vunpack.c.l.b16 %v48
    %v193 = vpack.c.b16 %v190, %v189
    %v194 = vpack.c.b16 %v192, %v191
    %vm197 = vcmask 261120
    %v199 = vsel %vm197, %v177, 0
    %v202 = vsel %vm197, %v178, 0
    %v205 = vsel %vm197, %v179, 0
    %v208 = vsel %vm197, %v180, 0
    %v211 = vsel %vm197, %v181, 0
    %v214 = vsel %vm197, %v182, 0
    %v217 = vsel %vm197, %v183, 0
    %v220 = vsel %vm197, %v184, 0
    %222 = vmatpush.bf16.msra.mxu0 0
    %223 = vmatpush.bf16.msra.mxu0 0
    %224 = vmatpush.bf16.msra.mxu0 0
    %225 = vmatpush.bf16.msra.mxu0 0
    %226 = vmatpush.bf16.msra.mxu0 0
    %227 = vmatpush.bf16.msra.mxu0 0
    %228 = vmatpush.bf16.msra.mxu0 %v194
    %229 = vmatpush.bf16.msra.mxu0 %v193
    %230 = vmatmul.bf16.gmra.mxu0 %v199
    %v231 = vpop.f32.mrf.mxu0
    %v232 = vadd.f32 %v68, %v231
    %v233 = vpop.f32.mrf.mxu0
    %v234 = vadd.f32 %v73, %v233
    %235 = vmatmul.bf16.gmra.mxu0 %v202
    %v236 = vpop.f32.mrf.mxu0
    %v237 = vadd.f32 %v78, %v236
    %v238 = vpop.f32.mrf.mxu0
    %v239 = vadd.f32 %v83, %v238
    %240 = vmatmul.bf16.gmra.mxu0 %v205
    %v241 = vpop.f32.mrf.mxu0
    %v242 = vadd.f32 %v88, %v241
    %v243 = vpop.f32.mrf.mxu0
    %v244 = vadd.f32 %v93, %v243
    %245 = vmatmul.bf16.gmra.mxu0 %v208
    %v246 = vpop.f32.mrf.mxu0
    %v247 = vadd.f32 %v98, %v246
    %v248 = vpop.f32.mrf.mxu0
    %v249 = vadd.f32 %v103, %v248
    %250 = vmatmul.bf16.gmra.mxu0 %v211
    %v251 = vpop.f32.mrf.mxu0
    %v252 = vadd.f32 %v108, %v251
    %v253 = vpop.f32.mrf.mxu0
    %v254 = vadd.f32 %v113, %v253
    %255 = vmatmul.bf16.gmra.mxu0 %v214
    %v256 = vpop.f32.mrf.mxu0
    %v257 = vadd.f32 %v118, %v256
    %v258 = vpop.f32.mrf.mxu0
    %v259 = vadd.f32 %v123, %v258
    %260 = vmatmul.bf16.gmra.mxu0 %v217
    %v261 = vpop.f32.mrf.mxu0
    %v262 = vadd.f32 %v128, %v261
    %v263 = vpop.f32.mrf.mxu0
    %v264 = vadd.f32 %v133, %v263
    %265 = vmatmul.bf16.gmra.mxu0 %v220
    %v266 = vpop.f32.mrf.mxu0
    %v267 = vadd.f32 %v138, %v266
    %v268 = vpop.f32.mrf.mxu0
    %v269 = vadd.f32 %v143, %v268
    %270 = vdwg.mxu0
    %v271 = vmax.f32 %v232, 0.0
    %v272 = vmax.f32 %v234, 0.0
    %v273 = vmax.f32 %v237, 0.0
    %v274 = vmax.f32 %v239, 0.0
    %v275 = vmax.f32 %v242, 0.0
    %v276 = vmax.f32 %v244, 0.0
    %v277 = vmax.f32 %v247, 0.0
    %v278 = vmax.f32 %v249, 0.0
    %v279 = vmax.f32 %v252, 0.0
    %v280 = vmax.f32 %v254, 0.0
    %v281 = vmax.f32 %v257, 0.0
    %v282 = vmax.f32 %v259, 0.0
    %v283 = vmax.f32 %v262, 0.0
    %v284 = vmax.f32 %v264, 0.0
    %v285 = vmax.f32 %v267, 0.0
    %v286 = vmax.f32 %v269, 0.0
    %v287 = vld [vmem:[%s3] sm:$0xf]
    %v288 = vld [vmem:[%s3 + $0x4] sm:$0xf]
    %v289 = vld [vmem:[%s3 + $0x8] sm:$0xf]
    %v290 = vld [vmem:[%s3 + $0xc] sm:$0xf]
    %v291 = vld [vmem:[%s3 + $0x10] sm:$0xf]
    %v292 = vld [vmem:[%s3 + $0x14] sm:$0xf]
    %v293 = vld [vmem:[%s3 + $0x18] sm:$0xf]
    %v294 = vld [vmem:[%s3 + $0x1c] sm:$0xf]
    %v295 = vpack.c.bf16 %v272, %v271
    %v296 = vpack.c.bf16 %v274, %v273
    %v297 = vpack.c.bf16 %v276, %v275
    %v298 = vpack.c.bf16 %v278, %v277
    %v299 = vpack.c.bf16 %v280, %v279
    %v300 = vpack.c.bf16 %v282, %v281
    %v301 = vpack.c.bf16 %v284, %v283
    %v302 = vpack.c.bf16 %v286, %v285
    %v303 = vld [vmem:[%s4] sm:$0xff]
    %v304 = vld [vmem:[%s4 + $0x8] sm:$0xff]
    %v305 = vld [vmem:[%s4 + $0x10] sm:$0xff]
    %v306 = vld [vmem:[%s4 + $0x18] sm:$0xff]
    %v307 = vld [vmem:[%s4 + $0x20] sm:$0xff]
    %v308 = vld [vmem:[%s4 + $0x28] sm:$0xff]
    %v309 = vld [vmem:[%s4 + $0x30] sm:$0xff]
    %v310 = vld [vmem:[%s4 + $0x38] sm:$0xff]
    %312 = vset.pattern.permute.xlu0 0
    %313 = vperm.xlu0 %312, %v303
    %v314 = vpop.permute.xlu0 %313
    %317 = vset.pattern.permute.xlu0 0
    %318 = vperm.xlu0 %317, %v304
    %v319 = vpop.permute.xlu0 %318
    %322 = vset.pattern.permute.xlu0 0
    %323 = vperm.xlu0 %322, %v305
    %v324 = vpop.permute.xlu0 %323
    %327 = vset.pattern.permute.xlu0 0
    %328 = vperm.xlu0 %327, %v306
    %v329 = vpop.permute.xlu0 %328
    %332 = vset.pattern.permute.xlu0 0
    %333 = vperm.xlu0 %332, %v307
    %v334 = vpop.permute.xlu0 %333
    %337 = vset.pattern.permute.xlu0 0
    %338 = vperm.xlu0 %337, %v308
    %v339 = vpop.permute.xlu0 %338
    %342 = vset.pattern.permute.xlu0 0
    %343 = vperm.xlu0 %342, %v309
    %v344 = vpop.permute.xlu0 %343
    %347 = vset.pattern.permute.xlu0 0
    %348 = vperm.xlu0 %347, %v310
    %v349 = vpop.permute.xlu0 %348
    %v359 = vunpack.c.l.b16 %v287
    %v360 = vunpack.c.l.b16 %v288
    %v361 = vunpack.c.l.b16 %v289
    %v362 = vunpack.c.l.b16 %v290
    %v363 = vunpack.c.l.b16 %v291
    %v364 = vunpack.c.l.b16 %v292
    %v365 = vunpack.c.l.b16 %v293
    %v366 = vunpack.c.l.b16 %v294
    %v367 = vpack.c.b16 %v360, %v359
    %v368 = vpack.c.b16 %v362, %v361
    %v369 = vpack.c.b16 %v364, %v363
    %v370 = vpack.c.b16 %v366, %v365
    %375 = vmatpush.bf16.msra.mxu0 %v302
    %376 = vmatpush.bf16.msra.mxu0 %v301
    %377 = vmatpush.bf16.msra.mxu0 %v300
    %378 = vmatpush.bf16.msra.mxu0 %v299
    %379 = vmatpush.bf16.msra.mxu0 %v298
    %380 = vmatpush.bf16.msra.mxu0 %v297
    %381 = vmatpush.bf16.msra.mxu0 %v296
    %382 = vmatpush.bf16.msra.mxu0 %v295
    %383 = vmatmul.bf16.gmra.mxu0 %v367
    %v384 = vpop.f32.mrf.mxu0
    %v385 = vadd.f32 %v314, %v384
    %v386 = vpop.f32.mrf.mxu0
    %v387 = vadd.f32 %v319, %v386
    %388 = vmatmul.bf16.gmra.mxu0 %v368
    %v389 = vpop.f32.mrf.mxu0
    %v390 = vadd.f32 %v324, %v389
    %v391 = vpop.f32.mrf.mxu0
    %v392 = vadd.f32 %v329, %v391
    %393 = vmatmul.bf16.gmra.mxu0 %v369
    %v394 = vpop.f32.mrf.mxu0
    %v395 = vadd.f32 %v334, %v394
    %v396 = vpop.f32.mrf.mxu0
    %v397 = vadd.f32 %v339, %v396
    %398 = vmatmul.bf16.gmra.mxu0 %v370
    %v399 = vpop.f32.mrf.mxu0
    %v400 = vadd.f32 %v344, %v399
    %v401 = vpop.f32.mrf.mxu0
    %v402 = vadd.f32 %v349, %v401
    %403 = vdwg.mxu0
    %v404 = vmax.f32 %v385, 0.0
    %v405 = vmax.f32 %v387, 0.0
    %v406 = vmax.f32 %v390, 0.0
    %v407 = vmax.f32 %v392, 0.0
    %v408 = vmax.f32 %v395, 0.0
    %v409 = vmax.f32 %v397, 0.0
    %v410 = vmax.f32 %v400, 0.0
    %v411 = vmax.f32 %v402, 0.0
    %v412 = vld [vmem:[%s5] sm:$0xff]
    %v413 = vld [vmem:[%s5 + $0x8] sm:$0xff]
    %v414 = vld [vmem:[%s5 + $0x10] sm:$0xff]
    %v415 = vld [vmem:[%s5 + $0x18] sm:$0xff]
    %v416 = vld [vmem:[%s5 + $0x20] sm:$0xff]
    %v417 = vld [vmem:[%s5 + $0x28] sm:$0xff]
    %v418 = vld [vmem:[%s5 + $0x30] sm:$0xff]
    %v419 = vld [vmem:[%s5 + $0x38] sm:$0xff]
    %421 = vset.pattern.permute.xlu0 0
    %422 = vperm.xlu0 %421, %v412
    %v423 = vpop.permute.xlu0 %422
    %426 = vset.pattern.permute.xlu0 0
    %427 = vperm.xlu0 %426, %v413
    %v428 = vpop.permute.xlu0 %427
    %431 = vset.pattern.permute.xlu0 0
    %432 = vperm.xlu0 %431, %v414
    %v433 = vpop.permute.xlu0 %432
    %436 = vset.pattern.permute.xlu0 0
    %437 = vperm.xlu0 %436, %v415
    %v438 = vpop.permute.xlu0 %437
    %441 = vset.pattern.permute.xlu0 0
    %442 = vperm.xlu0 %441, %v416
    %v443 = vpop.permute.xlu0 %442
    %446 = vset.pattern.permute.xlu0 0
    %447 = vperm.xlu0 %446, %v417
    %v448 = vpop.permute.xlu0 %447
    %451 = vset.pattern.permute.xlu0 0
    %452 = vperm.xlu0 %451, %v418
    %v453 = vpop.permute.xlu0 %452
    %456 = vset.pattern.permute.xlu0 0
    %457 = vperm.xlu0 %456, %v419
    %v458 = vpop.permute.xlu0 %457
    %v460 = vmul.f32 %v404, %v423
    %v461 = vmul.f32 %v405, %v428
    %v462 = vmul.f32 %v406, %v433
    %v463 = vmul.f32 %v407, %v438
    %v464 = vmul.f32 %v408, %v443
    %v465 = vmul.f32 %v409, %v448
    %v466 = vmul.f32 %v410, %v453
    %v467 = vmul.f32 %v411, %v458
    %vm468 = vcmask 64512
    %v469 = vsel %vm468, %v460, 0.0
    %v470 = vsel %vm468, %v461, 0.0
    %v471 = vadd.f32 %v469, %v470
    %v472 = vsel %vm468, %v462, 0.0
    %v473 = vadd.f32 %v471, %v472
    %v474 = vsel %vm468, %v463, 0.0
    %v475 = vadd.f32 %v473, %v474
    %v476 = vsel %vm468, %v464, 0.0
    %v477 = vadd.f32 %v475, %v476
    %v478 = vsel %vm468, %v465, 0.0
    %v479 = vadd.f32 %v477, %v478
    %v480 = vsel %vm468, %v466, 0.0
    %v481 = vadd.f32 %v479, %v480
    %v482 = vsel %vm468, %v467, 0.0
    %v483 = vadd.f32 %v481, %v482
    %v484 = vrot.slane %v483, 4
    %v485 = vadd.f32 %v483, %v484
    %v486 = vrot.slane %v485, 2
    %v487 = vadd.f32 %v485, %v486
    %v488 = vrot.slane %v487, 1
    %v489 = vadd.f32 %v487, %v488
    %s490 = sld [smem:[#allocation2]]
    %v491 = vstv %s490
    %v492 = vadd.f32 %v489, %v491
    %v493 = vtanh.pop %v492
    %vm494 = vcmask 57344
    %495 = vst.msk [vmem:[#allocation3] sm:$0x1] %vm494, %v493
    // Predicated region
    $region30: #{tpu_custom_call.1} parent=1 // pred_check
      _
    $region31: #{tpu_custom_call.1} parent=1 // pred_check_branch
      %497 = sbr.rel (0) target = $region33
    $region32: #{tpu_custom_call.1} parent=1 // pred_region
      %499 = vsyncadd [#allocation4], 0
      %s501 = sshll.u32 [#allocation3], 4
      %s502 = int_to_ptr.vmem [resolvable:$true] %s501
      %s503 = sshll.u32 %s7, 4
      %s504 = int_to_ptr.hbm [resolvable:$true] %s503
      %506 = dma.vmem_to_hbm [thread:$0]  %s502, 16, %s504, [#allocation4]
    $region33: #{tpu_custom_call.1} parent=1 // pred_fallthru
      _
    // Predicated region
    $region34: #{tpu_custom_call.1} parent=1 // pred_check
      _
    $region35: #{tpu_custom_call.1} parent=1 // pred_check_branch
      %508 = sbr.rel (0) target = $region37
    $region36: #{tpu_custom_call.1} parent=1 // pred_region
      %510 = dma.done [#allocation4], 16
    $region37: #{tpu_custom_call.1} parent=1 // pred_fallthru
      _
    %511 = vsyncpa [#allocation4], 1

</llo_original>
